<compile_context>
chip_gen: v7x
topology: tpu7x:2x2x1
jax: 0.10.0
libtpu: 0.0.40
codegen_flags: <defaults>
</compile_context>

<pallas_src>
import functools

import jax
import jax.numpy as jnp
from jax.experimental import pallas as pl
from jax.experimental.pallas import tpu as pltpu

KSIZE = 3
EPS = 1e-5  # BatchNorm2d default eps


def resnet_block_kernel(im_rows, x_ref, b_ref, g_ref, gamma_ref, beta_ref, out_ref):
    """Fused conv3x3 (stride 1, pad 1, no bias) + training-mode BN + residual.

    im_rows   : static H (rows per image), for the kh boundary masks
    x_ref     : (N*H, W*C)     bf16, lane-dense NHWC activations (single HBM read)
    b_ref     : (3*W*C, W*C)   bf16, banded im2col conv weight (kw taps + W-pad folded in)
    g_ref     : (W*C, W*C)     f32, channel-group mean matrix (reduce over W + lane
                                broadcast, 1/count folded in)
    gamma_ref : (1, W*C)       f32, BN gamma pre-broadcast along lanes
    beta_ref  : (1, W*C)       f32, BN beta  pre-broadcast along lanes
    out_ref   : (N*H, W*C)     f32, lane-dense output
    """
    rows, lanes = x_ref.shape
    x = x_ref[...]                                    # bf16, fed straight to the MXU

    # Three K=lanes dots against the static kh bands of the weight (no 3x-wide
    # im2col LHS, no bf16 shifted copies).  f32 accumulation on the MXU.
    a0 = jnp.dot(x, b_ref[0:lanes, :], preferred_element_type=jnp.float32)
    a1 = jnp.dot(x, b_ref[lanes:2 * lanes, :], preferred_element_type=jnp.float32)
    a2 = jnp.dot(x, b_ref[2 * lanes:3 * lanes, :], preferred_element_type=jnp.float32)

    # The kh = 0 / 2 row shift commutes with the per-row matmul, so apply it to
    # the f32 partials: XLU sublane roll + zero mask on the wrapped image-boundary
    # rows (output row r gets a0 from row r-1 and a2 from row r+1 of its image).
    rid = jax.lax.broadcasted_iota(jnp.int32, (rows, lanes), 0) % im_rows
    acc = (a1
           + jnp.where(rid == 0, 0.0, pltpu.roll(a0, shift=1, axis=0))
           + jnp.where(rid == im_rows - 1, 0.0, pltpu.roll(a2, shift=rows - 1, axis=0)))

    # One-pass training-mode BN statistics: per-lane sum / sum-of-squares,
    # then ONE fused (2, L) @ (L, L) dot reduces over same-channel lanes and
    # broadcasts mean / E[y^2] back onto every lane.
    s_l = jnp.sum(acc, axis=0, keepdims=True)                     # (1, L)
    q_l = jnp.sum(acc * acc, axis=0, keepdims=True)               # (1, L)
    stats = jnp.concatenate([s_l, q_l], axis=0)                   # (2, L)
    red = jnp.dot(stats, g_ref[...], preferred_element_type=jnp.float32)
    mean_l = red[0:1, :]
    var_l = red[1:2, :] - mean_l * mean_l                         # biased variance
    inv_l = jax.lax.rsqrt(var_l + EPS)

    # Fold BN into one per-channel scale/shift; everything stays lane-dense.
    scale = inv_l * gamma_ref[...]                                # (1, L)
    shift = beta_ref[...] - mean_l * scale                        # (1, L)

    # Residual: the only f32 cast of the activation slab, at the store line.
    out_ref[...] = x_ref[...].astype(jnp.float32) + acc * scale + shift


def _banded_conv_weight(w_oihw, width):
    """Fold kw taps + zero padding along W into a (3*W*Ci, W*Co) matrix.

    B[kh*W*Ci + wi*Ci + ci, wo*Co + co] = w[co, ci, kh, wi - wo + 1]
    (zero when |wi - wo| > 1), so a kh-shifted lane-dense row
    x_kh[n, h, wi*Ci + ci] times B gives the kh-slice of the 3x3 conv at every
    output column wo, with W-boundary zero padding handled by the band edges.
    """
    co, ci, kh, kw = w_oihw.shape
    w_hwio = jnp.transpose(w_oihw, (2, 3, 1, 0)).astype(jnp.float32)   # (3,3,ci,co)
    wi = jnp.arange(width)[:, None]
    wo = jnp.arange(width)[None, :]
    tap = wi - wo + 1                                                  # kw tap index
    valid = ((tap >= 0) & (tap < kw)).astype(jnp.float32)              # (W, W)
    band = w_hwio[:, jnp.clip(tap, 0, kw - 1)]                         # (3, W, W, ci, co)
    band = band * valid[None, :, :, None, None]
    band = jnp.transpose(band, (0, 1, 3, 2, 4))                        # (kh, wi, ci, wo, co)
    return band.reshape(kh * width * ci, width * co)


def prepare_resnet_block_params(w_oihw, gamma, beta, n, h, w):
    """Constants that depend only on the weights and static shapes.

    Built ONCE and reused across forward calls (hoisted out of the per-forward
    path per the performance review).
    """
    c = w_oihw.shape[0]
    l = w * c
    count = n * h * w
    b = _banded_conv_weight(w_oihw, w).astype(jnp.bfloat16)            # (3*l, l)
    # Channel-group mean matrix: (row_sums @ G)[l'] = mean over lanes sharing
    # the same channel, already broadcast back onto every lane.
    lane = jnp.arange(l)
    g = ((lane[:, None] % c) == (lane[None, :] % c)).astype(jnp.float32) / count
    gamma_l = jnp.tile(jnp.asarray(gamma, jnp.float32).reshape(1, c), (1, w))  # (1, l)
    beta_l = jnp.tile(jnp.asarray(beta, jnp.float32).reshape(1, c), (1, w))    # (1, l)
    return b, g, gamma_l, beta_l


@jax.jit
def resnet_block_forward(x_nchw, b, g, gamma_l, beta_l):
    """Fused ResnetBlock forward.  NCHW in / NCHW out (PyTorch convention).

    The NCHW <-> lane-dense conversions stay outside the kernel on purpose so
    the kernel's own loads/stores stay lane-dense; if the surrounding model is
    NHWC end-to-end these two transposes disappear entirely.
    """
    n, c, h, w = x_nchw.shape
    l = w * c

    # Single lane-dense activation slab, streamed as bf16 (one HBM read).
    x_l = jnp.transpose(x_nchw, (0, 2, 3, 1)).reshape(n * h, l).astype(jnp.bfloat16)

    vmem = pl.BlockSpec(memory_space=pltpu.MemorySpace.VMEM)
    out = pl.pallas_call(
        functools.partial(resnet_block_kernel, h),
        out_shape=jax.ShapeDtypeStruct((n * h, l), jnp.float32),
        in_specs=[vmem, vmem, vmem, vmem, vmem],
        out_specs=vmem,
        # Explicit VMEM budget (well within v5e/v6e 128 MiB and v7x 64 MiB).
        compiler_params=pltpu.CompilerParams(vmem_limit_bytes=32 * 1024 * 1024),
    )(x_l, b, g, gamma_l, beta_l)

    return jnp.transpose(out.reshape(n, h, w, c), (0, 3, 1, 2))          # back to NCHW


def reference(x_nchw, w_oihw, gamma, beta):
    """Pure-JAX f32 reference mirroring the PyTorch forward (training-mode BN)."""
    y = jax.lax.conv_general_dilated(
        x_nchw, w_oihw, window_strides=(1, 1), padding=((1, 1), (1, 1)),
        dimension_numbers=("NCHW", "OIHW", "NCHW"))
    mean = jnp.mean(y, axis=(0, 2, 3), keepdims=True)
    var = jnp.mean((y - mean) ** 2, axis=(0, 2, 3), keepdims=True)
    yn = (y - mean) * jax.lax.rsqrt(var + EPS)
    yn = yn * gamma.reshape(1, -1, 1, 1) + beta.reshape(1, -1, 1, 1)
    return x_nchw + yn


if __name__ == "__main__":
    conv_dim = 8             # channels (conv_dim in the PyTorch module)
    N, H, W = 2, 16, 16      # W * conv_dim = 128 -> fully lane-dense layout

    key = jax.random.PRNGKey(0)
    kx, kwt, kg, kb = jax.random.split(key, 4)
    # Test data is quantized to bf16 so the bf16-streamed kernel and the f32
    # reference see bit-identical operand values (keeps the check tight).
    x = jax.random.normal(kx, (N, conv_dim, H, W), jnp.float32)
    x = x.astype(jnp.bfloat16).astype(jnp.float32)
    wgt = jax.random.normal(kwt, (conv_dim, conv_dim, KSIZE, KSIZE), jnp.float32) * 0.1
    wgt = wgt.astype(jnp.bfloat16).astype(jnp.float32)
    gamma = 1.0 + 0.1 * jax.random.normal(kg, (conv_dim,), jnp.float32)
    beta = 0.1 * jax.random.normal(kb, (conv_dim,), jnp.float32)

    # Per-weight constants built once, reused for every forward call.
    b, g, gamma_l, beta_l = prepare_resnet_block_params(wgt, gamma, beta, N, H, W)

    # TODO(synk): BatchNorm2d's running_mean/running_var buffer update (a training
    # side effect, not part of the returned tensor) is not implemented.
    out = jax.block_until_ready(resnet_block_forward(x, b, g, gamma_l, beta_l))
    ref = reference(x, wgt, gamma, beta)
    assert out.shape == (N, conv_dim, H, W)
    err = float(jnp.max(jnp.abs(out - ref)))
    assert err < 1e-3, f"mismatch vs reference: {err}"
    print("KERNEL_OK")
</pallas_src>

<mosaic_0001>
module attributes {stable_mosaic.version = 11 : i64} {
  func.func @resnet_block_kernel(%arg0: memref<32x128xbf16, #tpu.memory_space<vmem>>, %arg1: memref<384x128xbf16, #tpu.memory_space<vmem>>, %arg2: memref<128x128xf32, #tpu.memory_space<vmem>>, %arg3: memref<1x128xf32, #tpu.memory_space<vmem>>, %arg4: memref<1x128xf32, #tpu.memory_space<vmem>>, %arg5: memref<32x128xf32, #tpu.memory_space<vmem>>) attributes {dimension_semantics = [], scalar_prefetch = 0 : i64, scratch_operands = 0 : i64, tpu.core_type = #tpu.core_type<tc>} {
    %c0 = arith.constant 0 : index
    %c0_0 = arith.constant 0 : index
    %0 = vector.load %arg0[%c0, %c0_0] : memref<32x128xbf16, #tpu.memory_space<vmem>>, vector<32x128xbf16>
    %c0_1 = arith.constant 0 : index
    %c0_2 = arith.constant 0 : index
    %1 = vector.load %arg1[%c0_1, %c0_2] : memref<384x128xbf16, #tpu.memory_space<vmem>>, vector<128x128xbf16>
    %cst = arith.constant dense<0.000000e+00> : vector<32x128xf32>
    %2 = tpu.matmul %0, %1, %cst {dimension_numbers = #tpu.dot_dimension_numbers<[1], [0], [0], [1], [0, 0, 1, 1], [], []>} : vector<32x128xbf16>, vector<128x128xbf16>, vector<32x128xf32> -> vector<32x128xf32>
    %c128 = arith.constant 128 : index
    %c0_3 = arith.constant 0 : index
    %3 = vector.load %arg1[%c128, %c0_3] : memref<384x128xbf16, #tpu.memory_space<vmem>>, vector<128x128xbf16>
    %cst_4 = arith.constant dense<0.000000e+00> : vector<32x128xf32>
    %4 = tpu.matmul %0, %3, %cst_4 {dimension_numbers = #tpu.dot_dimension_numbers<[1], [0], [0], [1], [0, 0, 1, 1], [], []>} : vector<32x128xbf16>, vector<128x128xbf16>, vector<32x128xf32> -> vector<32x128xf32>
    %c256 = arith.constant 256 : index
    %c0_5 = arith.constant 0 : index
    %5 = vector.load %arg1[%c256, %c0_5] : memref<384x128xbf16, #tpu.memory_space<vmem>>, vector<128x128xbf16>
    %cst_6 = arith.constant dense<0.000000e+00> : vector<32x128xf32>
    %6 = tpu.matmul %0, %5, %cst_6 {dimension_numbers = #tpu.dot_dimension_numbers<[1], [0], [0], [1], [0, 0, 1, 1], [], []>} : vector<32x128xbf16>, vector<128x128xbf16>, vector<32x128xf32> -> vector<32x128xf32>
    %7 = tpu.iota {dimensions = array<i32: 0>} : vector<32x128xi32>
    %c16_i32 = arith.constant 16 : i32
    %c0_i32 = arith.constant 0 : i32
    %8 = arith.cmpi eq, %c16_i32, %c0_i32 : i32
    %c1_i32 = arith.constant 1 : i32
    %9 = arith.select %8, %c1_i32, %c16_i32 : i32
    %10 = vector.broadcast %9 : i32 to vector<32x128xi32>
    %11 = arith.remsi %7, %10 : vector<32x128xi32>
    %c0_i32_7 = arith.constant 0 : i32
    %12 = vector.broadcast %c0_i32_7 : i32 to vector<32x128xi32>
    %13 = arith.cmpi ne, %11, %12 : vector<32x128xi32>
    %c0_i32_8 = arith.constant 0 : i32
    %14 = vector.broadcast %c0_i32_8 : i32 to vector<32x128xi32>
    %15 = arith.cmpi slt, %11, %14 : vector<32x128xi32>
    %c0_i32_9 = arith.constant 0 : i32
    %16 = arith.cmpi slt, %9, %c0_i32_9 : i32
    %17 = vector.broadcast %16 : i1 to vector<32x128xi1>
    %18 = vector.broadcast %17 : vector<32x128xi1> to vector<32x128xi1>
    %19 = arith.xori %15, %18 : vector<32x128xi1>
    %20 = arith.andi %19, %13 : vector<32x128xi1>
    %21 = vector.broadcast %9 : i32 to vector<32x128xi32>
    %22 = arith.addi %11, %21 : vector<32x128xi32>
    %23 = arith.select %20, %22, %11 : vector<32x128xi1>, vector<32x128xi32>
    %c0_i32_10 = arith.constant 0 : i32
    %24 = vector.broadcast %c0_i32_10 : i32 to vector<32x128xi32>
    %25 = arith.cmpi eq, %23, %24 : vector<32x128xi32>
    %c1_i32_11 = arith.constant 1 : i32
    %26 = tpu.dynamic_rotate %2 by %c1_i32_11 dim 0 : vector<32x128xf32>, i32 -> vector<32x128xf32>
    %cst_12 = arith.constant 0.000000e+00 : f32
    %27 = vector.broadcast %cst_12 : f32 to vector<32x128xf32>
    %28 = arith.select %25, %27, %26 : vector<32x128xi1>, vector<32x128xf32>
    %29 = arith.addf %4, %28 : vector<32x128xf32>
    %c15_i32 = arith.constant 15 : i32
    %30 = vector.broadcast %c15_i32 : i32 to vector<32x128xi32>
    %31 = arith.cmpi eq, %23, %30 : vector<32x128xi32>
    %c31_i32 = arith.constant 31 : i32
    %32 = tpu.dynamic_rotate %6 by %c31_i32 dim 0 : vector<32x128xf32>, i32 -> vector<32x128xf32>
    %cst_13 = arith.constant 0.000000e+00 : f32
    %33 = vector.broadcast %cst_13 : f32 to vector<32x128xf32>
    %34 = arith.select %31, %33, %32 : vector<32x128xi1>, vector<32x128xf32>
    %35 = arith.addf %29, %34 : vector<32x128xf32>
    %cst_14 = arith.constant dense<0.000000e+00> : vector<128xf32>
    %36 = vector.multi_reduction <add>, %35, %cst_14 [0] : vector<32x128xf32> to vector<128xf32>
    %37 = vector.shape_cast %36 : vector<128xf32> to vector<1x128xf32>
    %38 = arith.mulf %35, %35 : vector<32x128xf32>
    %cst_15 = arith.constant dense<0.000000e+00> : vector<128xf32>
    %39 = vector.multi_reduction <add>, %38, %cst_15 [0] : vector<32x128xf32> to vector<128xf32>
    %40 = vector.shape_cast %39 : vector<128xf32> to vector<1x128xf32>
    %41 = tpu.concatenate %37, %40 in 0 : vector<1x128xf32>, vector<1x128xf32> -> vector<2x128xf32>
    %c0_16 = arith.constant 0 : index
    %c0_17 = arith.constant 0 : index
    %42 = vector.load %arg2[%c0_16, %c0_17] : memref<128x128xf32, #tpu.memory_space<vmem>>, vector<128x128xf32>
    %cst_18 = arith.constant dense<0.000000e+00> : vector<2x128xf32>
    %43 = tpu.matmul %41, %42, %cst_18 {dimension_numbers = #tpu.dot_dimension_numbers<[1], [0], [0], [1], [0, 0, 1, 1], [], []>} : vector<2x128xf32>, vector<128x128xf32>, vector<2x128xf32> -> vector<2x128xf32>
    %44 = vector.extract_strided_slice %43 {offsets = [0, 0], sizes = [1, 128], strides = [1, 1]} : vector<2x128xf32> to vector<1x128xf32>
    %45 = vector.extract_strided_slice %43 {offsets = [1, 0], sizes = [1, 128], strides = [1, 1]} : vector<2x128xf32> to vector<1x128xf32>
    %46 = arith.mulf %44, %44 : vector<1x128xf32>
    %47 = arith.subf %45, %46 : vector<1x128xf32>
    %cst_19 = arith.constant 9.99999974E-6 : f32
    %48 = vector.broadcast %cst_19 : f32 to vector<1x128xf32>
    %49 = arith.addf %47, %48 : vector<1x128xf32>
    %50 = math.rsqrt %49 : vector<1x128xf32>
    %c0_20 = arith.constant 0 : index
    %c0_21 = arith.constant 0 : index
    %51 = vector.load %arg3[%c0_20, %c0_21] : memref<1x128xf32, #tpu.memory_space<vmem>>, vector<1x128xf32>
    %52 = arith.mulf %50, %51 : vector<1x128xf32>
    %c0_22 = arith.constant 0 : index
    %c0_23 = arith.constant 0 : index
    %53 = vector.load %arg4[%c0_22, %c0_23] : memref<1x128xf32, #tpu.memory_space<vmem>>, vector<1x128xf32>
    %54 = arith.mulf %44, %52 : vector<1x128xf32>
    %55 = arith.subf %53, %54 : vector<1x128xf32>
    %c0_24 = arith.constant 0 : index
    %c0_25 = arith.constant 0 : index
    %56 = vector.load %arg0[%c0_24, %c0_25] : memref<32x128xbf16, #tpu.memory_space<vmem>>, vector<32x128xbf16>
    %57 = arith.extf %56 : vector<32x128xbf16> to vector<32x128xf32>
    %58 = vector.broadcast %52 : vector<1x128xf32> to vector<32x128xf32>
    %59 = arith.mulf %35, %58 : vector<32x128xf32>
    %60 = arith.addf %57, %59 : vector<32x128xf32>
    %61 = vector.broadcast %55 : vector<1x128xf32> to vector<32x128xf32>
    %62 = arith.addf %60, %61 : vector<32x128xf32>
    %c0_26 = arith.constant 0 : index
    %c0_27 = arith.constant 0 : index
    %63 = vector.load %arg5[%c0_26, %c0_27] : memref<32x128xf32, #tpu.memory_space<vmem>>, vector<32x128xf32>
    tpu.vector_store %arg5[%c0_26, %c0_27], %62 {strides = array<i32>} : memref<32x128xf32, #tpu.memory_space<vmem>>, vector<32x128xf32>,
    return
  }
}

</mosaic_0001>

<llo_original>
// kernel: resnet_block_forward.1
$region0: #{resnet_block_forward.1}
  #allocation0 [shape = 'u32[]', space=smem, size = 0x4, offset = 0x4, fixed_abs, tag = 'smem constant byte address 0x4 - core index']
  #allocation1 [shape = 'u32[144,128]{1,0:T(1,128)}', space=vmem, size = 0x12000, scoped, tag = 'internal scratch']
  %s0 = inlined_call_operand.vmem [shape: bf16[32,128], index: 0, kind: input, shape index: {}]
  %s1 = inlined_call_operand.vmem [shape: bf16[384,128], index: 1, kind: input, shape index: {}]
  %s2 = inlined_call_operand.vmem [shape: f32[128,128], index: 2, kind: input, shape index: {}]
  %s3 = inlined_call_operand.vmem [shape: f32[1,128], index: 3, kind: input, shape index: {}]
  %s4 = inlined_call_operand.vmem [shape: f32[1,128], index: 4, kind: input, shape index: {}]
  %s5 = inlined_call_operand.vmem [shape: f32[32,128], index: 5, kind: output, shape index: {}]
  %s6 = sld [smem:[#allocation0]]
  $region30: #{resnet_block_forward.1} parent=0
    _
  %s8 = ssub.s32 1, %s6
  %s9 = scalar_select 0, %s8, %s6
  // Predicated region
  $region2: #{resnet_block_forward.1} parent=0 // pred_check
    _
  $region3: #{resnet_block_forward.1} parent=0 // pred_check_branch
    %11 = sbr.rel (0) target = $region5
  $region4: #{resnet_block_forward.1} parent=0 // pred_region
    _
  $region5: #{resnet_block_forward.1} parent=0 // pred_fallthru
    _
  // Predicated region
  $region6: #{resnet_block_forward.1} parent=0 // pred_check
    _
  $region7: #{resnet_block_forward.1} parent=0 // pred_check_branch
    %13 = sbr.rel (0) target = $region9
  $region8: #{resnet_block_forward.1} parent=0 // pred_region
    _
  $region9: #{resnet_block_forward.1} parent=0 // pred_fallthru
    _
  // Predicated region
  $region10: #{resnet_block_forward.1} parent=0 // pred_check
    _
  $region11: #{resnet_block_forward.1} parent=0 // pred_check_branch
    %15 = sbr.rel (0) target = $region13
  $region12: #{resnet_block_forward.1} parent=0 // pred_region
    _
  $region13: #{resnet_block_forward.1} parent=0 // pred_fallthru
    _
  // Predicated region
  $region14: #{resnet_block_forward.1} parent=0 // pred_check
    _
  $region15: #{resnet_block_forward.1} parent=0 // pred_check_branch
    %17 = sbr.rel (0) target = $region17
  $region16: #{resnet_block_forward.1} parent=0 // pred_region
    _
  $region17: #{resnet_block_forward.1} parent=0 // pred_fallthru
    _
  // Predicated region
  $region18: #{resnet_block_forward.1} parent=0 // pred_check
    _
  $region19: #{resnet_block_forward.1} parent=0 // pred_check_branch
    %19 = sbr.rel (0) target = $region21
  $region20: #{resnet_block_forward.1} parent=0 // pred_region
    _
  $region21: #{resnet_block_forward.1} parent=0 // pred_fallthru
    _
  %v21 = vld [vmem:[%s0] sm:$0xf]
  %v22 = vld [vmem:[%s0 + $0x4] sm:$0xf]
  %v23 = vld [vmem:[%s0 + $0x8] sm:$0xf]
  %v24 = vld [vmem:[%s0 + $0xc] sm:$0xf]
  %v25 = vld [vmem:[%s1] sm:$0xf]
  %v26 = vld [vmem:[%s1 + $0x4] sm:$0xf]
  %v27 = vld [vmem:[%s1 + $0x8] sm:$0xf]
  %v28 = vld [vmem:[%s1 + $0xc] sm:$0xf]
  %v29 = vld [vmem:[%s1 + $0x10] sm:$0xf]
  %v30 = vld [vmem:[%s1 + $0x14] sm:$0xf]
  %v31 = vld [vmem:[%s1 + $0x18] sm:$0xf]
  %v32 = vld [vmem:[%s1 + $0x1c] sm:$0xf]
  %v33 = vld [vmem:[%s1 + $0x20] sm:$0xf]
  %v34 = vld [vmem:[%s1 + $0x24] sm:$0xf]
  %v35 = vld [vmem:[%s1 + $0x28] sm:$0xf]
  %v36 = vld [vmem:[%s1 + $0x2c] sm:$0xf]
  %v37 = vld [vmem:[%s1 + $0x30] sm:$0xf]
  %v38 = vld [vmem:[%s1 + $0x34] sm:$0xf]
  %v39 = vld [vmem:[%s1 + $0x38] sm:$0xf]
  %v40 = vld [vmem:[%s1 + $0x3c] sm:$0xf]
  %v45 = vunpack.c.l.b16 %v21
  %v46 = vunpack.c.l.b16 %v22
  %v47 = vunpack.c.l.b16 %v23
  %v48 = vunpack.c.l.b16 %v24
  %v49 = vpack.c.b16 %v46, %v45
  %v50 = vpack.c.b16 %v48, %v47
  %v69 = vunpack.c.l.b16 %v25
  %v70 = vunpack.c.l.b16 %v26
  %v71 = vunpack.c.l.b16 %v27
  %v72 = vunpack.c.l.b16 %v28
  %v73 = vunpack.c.l.b16 %v29
  %v74 = vunpack.c.l.b16 %v30
  %v75 = vunpack.c.l.b16 %v31
  %v76 = vunpack.c.l.b16 %v32
  %v77 = vunpack.c.l.b16 %v33
  %v78 = vunpack.c.l.b16 %v34
  %v79 = vunpack.c.l.b16 %v35
  %v80 = vunpack.c.l.b16 %v36
  %v81 = vunpack.c.l.b16 %v37
  %v82 = vunpack.c.l.b16 %v38
  %v83 = vunpack.c.l.b16 %v39
  %v84 = vunpack.c.l.b16 %v40
  %v85 = vpack.c.b16 %v70, %v69
  %v86 = vpack.c.b16 %v72, %v71
  %v87 = vpack.c.b16 %v74, %v73
  %v88 = vpack.c.b16 %v76, %v75
  %v89 = vpack.c.b16 %v78, %v77
  %v90 = vpack.c.b16 %v80, %v79
  %v91 = vpack.c.b16 %v82, %v81
  %v92 = vpack.c.b16 %v84, %v83
  %101 = vmatprep.subr.bf16.mxu0 0
  %102 = vmatpush1.bf16.msra.mxu0 %v85
  %103 = vmatprep.subr.bf16.mxu0 0
  %104 = vmatpush1.bf16.msra.mxu0 %v86
  %105 = vmatprep.subr.bf16.mxu0 0
  %106 = vmatpush1.bf16.msra.mxu0 %v87
  %107 = vmatprep.subr.bf16.mxu0 0
  %108 = vmatpush1.bf16.msra.mxu0 %v88
  %109 = vmatprep.subr.bf16.mxu0 0
  %110 = vmatpush1.bf16.msra.mxu0 %v89
  %111 = vmatprep.subr.bf16.mxu0 0
  %112 = vmatpush1.bf16.msra.mxu0 %v90
  %113 = vmatprep.subr.bf16.mxu0 0
  %114 = vmatpush1.bf16.msra.mxu0 %v91
  %115 = vmatprep.subr.bf16.mxu0 0
  %116 = vmatpush1.bf16.msra.mxu0 %v92
  %117 = vmatprep.subr.bf16.mxu0 0
  %118 = vmatpush1.bf16.msra.mxu0 0
  %119 = vmatprep.subr.bf16.mxu0 0
  %120 = vmatpush1.bf16.msra.mxu0 0
  %121 = vmatprep.subr.bf16.mxu0 0
  %122 = vmatpush1.bf16.msra.mxu0 0
  %123 = vmatprep.subr.bf16.mxu0 0
  %124 = vmatpush1.bf16.msra.mxu0 0
  %125 = vmatprep.subr.bf16.mxu0 0
  %126 = vmatpush1.bf16.msra.mxu0 0
  %127 = vmatprep.subr.bf16.mxu0 0
  %128 = vmatpush1.bf16.msra.mxu0 0
  %129 = vmatprep.subr.bf16.mxu0 0
  %130 = vmatpush1.bf16.msra.mxu0 0
  %131 = vmatprep.subr.bf16.mxu0 0
  %132 = vmatpush1.bf16.msra.mxu0 0
  %133 = vmatprep.mubr.bf16.mxu0 0
  %134 = vmatmul.mubr.bf16.gmra.mrb[0].mxu0 %v49
  %v135 = vpop.f32.mrb[0].mxu0
  %v136 = vadd.f32 0.0, %v135
  %v137 = vpop.f32.mrb[0].mxu0
  %v138 = vpop.f32.mrb[0].mxu0
  %v139 = vadd.f32 0.0, %v138
  %v140 = vpop.f32.mrb[0].mxu0
  %141 = vmatprep.mubr.bf16.mxu0 0
  %142 = vmatmul.mubr.bf16.gmra.mrb[0].mxu0 %v50
  %v143 = vpop.f32.mrb[0].mxu0
  %v144 = vadd.f32 0.0, %v143
  %v145 = vpop.f32.mrb[0].mxu0
  %v146 = vpop.f32.mrb[0].mxu0
  %v147 = vadd.f32 0.0, %v146
  %v148 = vpop.f32.mrb[0].mxu0
  %149 = vdwg.mxu0
  %v150 = vld [vmem:[%s1 + $0x40] sm:$0xf]
  %v151 = vld [vmem:[%s1 + $0x44] sm:$0xf]
  %v152 = vld [vmem:[%s1 + $0x48] sm:$0xf]
  %v153 = vld [vmem:[%s1 + $0x4c] sm:$0xf]
  %v154 = vld [vmem:[%s1 + $0x50] sm:$0xf]
  %v155 = vld [vmem:[%s1 + $0x54] sm:$0xf]
  %v156 = vld [vmem:[%s1 + $0x58] sm:$0xf]
  %v157 = vld [vmem:[%s1 + $0x5c] sm:$0xf]
  %v158 = vld [vmem:[%s1 + $0x60] sm:$0xf]
  %v159 = vld [vmem:[%s1 + $0x64] sm:$0xf]
  %v160 = vld [vmem:[%s1 + $0x68] sm:$0xf]
  %v161 = vld [vmem:[%s1 + $0x6c] sm:$0xf]
  %v162 = vld [vmem:[%s1 + $0x70] sm:$0xf]
  %v163 = vld [vmem:[%s1 + $0x74] sm:$0xf]
  %v164 = vld [vmem:[%s1 + $0x78] sm:$0xf]
  %v165 = vld [vmem:[%s1 + $0x7c] sm:$0xf]
  %v166 = vld [vmem:[%s1 + $0x80] sm:$0xf]
  %v167 = vld [vmem:[%s1 + $0x84] sm:$0xf]
  %v168 = vld [vmem:[%s1 + $0x88] sm:$0xf]
  %v169 = vld [vmem:[%s1 + $0x8c] sm:$0xf]
  %v170 = vld [vmem:[%s1 + $0x90] sm:$0xf]
  %v171 = vld [vmem:[%s1 + $0x94] sm:$0xf]
  %v172 = vld [vmem:[%s1 + $0x98] sm:$0xf]
  %v173 = vld [vmem:[%s1 + $0x9c] sm:$0xf]
  %v174 = vld [vmem:[%s1 + $0xa0] sm:$0xf]
  %v175 = vld [vmem:[%s1 + $0xa4] sm:$0xf]
  %v176 = vld [vmem:[%s1 + $0xa8] sm:$0xf]
  %v177 = vld [vmem:[%s1 + $0xac] sm:$0xf]
  %v178 = vld [vmem:[%s1 + $0xb0] sm:$0xf]
  %v179 = vld [vmem:[%s1 + $0xb4] sm:$0xf]
  %v180 = vld [vmem:[%s1 + $0xb8] sm:$0xf]
  %v181 = vld [vmem:[%s1 + $0xbc] sm:$0xf]
  %v198 = vunpack.c.l.b16 %v166
  %v199 = vunpack.c.l.b16 %v167
  %v200 = vunpack.c.l.b16 %v168
  %v201 = vunpack.c.l.b16 %v169
  %v202 = vunpack.c.l.b16 %v170
  %v203 = vunpack.c.l.b16 %v171
  %v204 = vunpack.c.l.b16 %v172
  %v205 = vunpack.c.l.b16 %v173
  %v206 = vunpack.c.l.b16 %v174
  %v207 = vunpack.c.l.b16 %v175
  %v208 = vunpack.c.l.b16 %v176
  %v209 = vunpack.c.l.b16 %v177
  %v210 = vunpack.c.l.b16 %v178
  %v211 = vunpack.c.l.b16 %v179
  %v212 = vunpack.c.l.b16 %v180
  %v213 = vunpack.c.l.b16 %v181
  %v214 = vpack.c.b16 %v199, %v198
  %v215 = vpack.c.b16 %v201, %v200
  %v216 = vpack.c.b16 %v203, %v202
  %v217 = vpack.c.b16 %v205, %v204
  %v218 = vpack.c.b16 %v207, %v206
  %v219 = vpack.c.b16 %v209, %v208
  %v220 = vpack.c.b16 %v211, %v210
  %v221 = vpack.c.b16 %v213, %v212
  %230 = vmatprep.subr.bf16.mxu0 0
  %231 = vmatpush1.bf16.msra.mxu0 %v214
  %232 = vmatprep.subr.bf16.mxu0 0
  %233 = vmatpush1.bf16.msra.mxu0 %v215
  %234 = vmatprep.subr.bf16.mxu0 0
  %235 = vmatpush1.bf16.msra.mxu0 %v216
  %236 = vmatprep.subr.bf16.mxu0 0
  %237 = vmatpush1.bf16.msra.mxu0 %v217
  %238 = vmatprep.subr.bf16.mxu0 0
  %239 = vmatpush1.bf16.msra.mxu0 %v218
  %240 = vmatprep.subr.bf16.mxu0 0
  %241 = vmatpush1.bf16.msra.mxu0 %v219
  %242 = vmatprep.subr.bf16.mxu0 0
  %243 = vmatpush1.bf16.msra.mxu0 %v220
  %244 = vmatprep.subr.bf16.mxu0 0
  %245 = vmatpush1.bf16.msra.mxu0 %v221
  %246 = vmatprep.subr.bf16.mxu0 0
  %247 = vmatpush1.bf16.msra.mxu0 0
  %248 = vmatprep.subr.bf16.mxu0 0
  %249 = vmatpush1.bf16.msra.mxu0 0
  %250 = vmatprep.subr.bf16.mxu0 0
  %251 = vmatpush1.bf16.msra.mxu0 0
  %252 = vmatprep.subr.bf16.mxu0 0
  %253 = vmatpush1.bf16.msra.mxu0 0
  %254 = vmatprep.subr.bf16.mxu0 0
  %255 = vmatpush1.bf16.msra.mxu0 0
  %256 = vmatprep.subr.bf16.mxu0 0
  %257 = vmatpush1.bf16.msra.mxu0 0
  %258 = vmatprep.subr.bf16.mxu0 0
  %259 = vmatpush1.bf16.msra.mxu0 0
  %260 = vmatprep.subr.bf16.mxu0 0
  %261 = vmatpush1.bf16.msra.mxu0 0
  %262 = vmatprep.mubr.bf16.mxu0 0
  %263 = vmatmul.mubr.bf16.gmra.mrb[0].mxu0 %v49
  %v264 = vpop.f32.mrb[0].mxu0
  %v265 = vadd.f32 0.0, %v264
  %v266 = vpop.f32.mrb[0].mxu0
  %v267 = vpop.f32.mrb[0].mxu0
  %v268 = vadd.f32 0.0, %v267
  %v269 = vpop.f32.mrb[0].mxu0
  %270 = vmatprep.mubr.bf16.mxu0 0
  %271 = vmatmul.mubr.bf16.gmra.mrb[0].mxu0 %v50
  %v272 = vpop.f32.mrb[0].mxu0
  %v273 = vadd.f32 0.0, %v272
  %v274 = vpop.f32.mrb[0].mxu0
  %v275 = vpop.f32.mrb[0].mxu0
  %v276 = vadd.f32 0.0, %v275
  %v277 = vpop.f32.mrb[0].mxu0
  %278 = vdwg.mxu0
  %v279 = vlaneseq
  %v280 = vshrl.u32 %v279, 7
  %v281 = vadd.s32 %v280, 8
  %v282 = vadd.s32 %v280, 16
  %v283 = vadd.s32 %v280, 24
  %vm284 = vcmp.lt.s32.totalorder %v280, 0
  %v285 = vsub.s32 0, %v280
  %v286 = vsel %vm284, %v285, %v280
  %v287 = vshrl.u32 %v286, 4
  %v288 = vand.u32 %v286, 15
  %v289 = vsub.s32 0, %v288
  %v290 = vsel %vm284, %v289, %v288
  %vm291 = vcmp.lt.s32.totalorder %v281, 0
  %v292 = vsub.s32 0, %v281
  %v293 = vsel %vm291, %v292, %v281
  %v294 = vshrl.u32 %v293, 4
  %v295 = vand.u32 %v293, 15
  %v296 = vsub.s32 0, %v295
  %v297 = vsel %vm291, %v296, %v295
  %vm298 = vcmp.lt.s32.totalorder %v282, 0
  %v299 = vsub.s32 0, %v282
  %v300 = vsel %vm298, %v299, %v282
  %v301 = vshrl.u32 %v300, 4
  %v302 = vand.u32 %v300, 15
  %v303 = vsub.s32 0, %v302
  %v304 = vsel %vm298, %v303, %v302
  %vm305 = vcmp.lt.s32.totalorder %v283, 0
  %v306 = vsub.s32 0, %v283
  %v307 = vsel %vm305, %v306, %v283
  %v308 = vshrl.u32 %v307, 4
  %v309 = vand.u32 %v307, 15
  %v310 = vsub.s32 0, %v309
  %v311 = vsel %vm305, %v310, %v309
  %vm312 = vcmp.ne.s32.totalorder %v290, 0
  %vm313 = vcmp.ne.s32.totalorder %v297, 0
  %vm314 = vcmp.ne.s32.totalorder %v304, 0
  %vm315 = vcmp.ne.s32.totalorder %v311, 0
  %vm316 = vcmp.lt.s32.totalorder %v290, 0
  %vm317 = vcmp.lt.s32.totalorder %v297, 0
  %vm318 = vcmp.lt.s32.totalorder %v304, 0
  %vm319 = vcmp.lt.s32.totalorder %v311, 0
  %vm320 = vmand %vm316, %vm312
  %vm321 = vmand %vm317, %vm313
  %vm322 = vmand %vm318, %vm314
  %vm323 = vmand %vm319, %vm315
  %v324 = vadd.s32 %v290, 16
  %v325 = vadd.s32 %v297, 16
  %v326 = vadd.s32 %v304, 16
  %v327 = vadd.s32 %v311, 16
  %v328 = vsel %vm320, %v324, %v290
  %v329 = vsel %vm321, %v325, %v297
  %v330 = vsel %vm322, %v326, %v304
  %v331 = vsel %vm323, %v327, %v311
  %vm332 = vcmp.eq.s32.totalorder %v328, 0
  %vm333 = vcmp.eq.s32.totalorder %v329, 0
  %vm334 = vcmp.eq.s32.totalorder %v330, 0
  %vm335 = vcmp.eq.s32.totalorder %v331, 0
  %v336 = vrot.slane %v136, 7
  %v337 = vrot.slane %v139, 7
  %v338 = vrot.slane %v144, 7
  %v339 = vrot.slane %v147, 7
  %vm340 = vcmp.lt.s32.totalorder %v280, 1
  %v341 = vsel %vm340, %v338, %v339
  %v342 = vsel %vm340, %v337, %v338
  %v343 = vsel %vm340, %v336, %v337
  %v344 = vsel %vm340, %v339, %v336
  %v345 = vsel %vm332, 0.0, %v344
  %v346 = vsel %vm333, 0.0, %v343
  %v347 = vsel %vm334, 0.0, %v342
  %v348 = vsel %vm335, 0.0, %v341
  %v365 = vunpack.c.l.b16 %v150
  %v366 = vunpack.c.l.b16 %v151
  %v367 = vunpack.c.l.b16 %v152
  %v368 = vunpack.c.l.b16 %v153
  %v369 = vunpack.c.l.b16 %v154
  %v370 = vunpack.c.l.b16 %v155
  %v371 = vunpack.c.l.b16 %v156
  %v372 = vunpack.c.l.b16 %v157
  %v373 = vunpack.c.l.b16 %v158
  %v374 = vunpack.c.l.b16 %v159
  %v375 = vunpack.c.l.b16 %v160
  %v376 = vunpack.c.l.b16 %v161
  %v377 = vunpack.c.l.b16 %v162
  %v378 = vunpack.c.l.b16 %v163
  %v379 = vunpack.c.l.b16 %v164
  %v380 = vunpack.c.l.b16 %v165
  %v381 = vpack.c.b16 %v366, %v365
  %v382 = vpack.c.b16 %v368, %v367
  %v383 = vpack.c.b16 %v370, %v369
  %v384 = vpack.c.b16 %v372, %v371
  %v385 = vpack.c.b16 %v374, %v373
  %v386 = vpack.c.b16 %v376, %v375
  %v387 = vpack.c.b16 %v378, %v377
  %v388 = vpack.c.b16 %v380, %v379
  %397 = vmatprep.subr.bf16.mxu0 0
  %398 = vmatpush1.bf16.msra.mxu0 %v381
  %399 = vmatprep.subr.bf16.mxu0 0
  %400 = vmatpush1.bf16.msra.mxu0 %v382
  %401 = vmatprep.subr.bf16.mxu0 0
  %402 = vmatpush1.bf16.msra.mxu0 %v383
  %403 = vmatprep.subr.bf16.mxu0 0
  %404 = vmatpush1.bf16.msra.mxu0 %v384
  %405 = vmatprep.subr.bf16.mxu0 0
  %406 = vmatpush1.bf16.msra.mxu0 %v385
  %407 = vmatprep.subr.bf16.mxu0 0
  %408 = vmatpush1.bf16.msra.mxu0 %v386
  %409 = vmatprep.subr.bf16.mxu0 0
  %410 = vmatpush1.bf16.msra.mxu0 %v387
  %411 = vmatprep.subr.bf16.mxu0 0
  %412 = vmatpush1.bf16.msra.mxu0 %v388
  %413 = vmatprep.subr.bf16.mxu0 0
  %414 = vmatpush1.bf16.msra.mxu0 0
  %415 = vmatprep.subr.bf16.mxu0 0
  %416 = vmatpush1.bf16.msra.mxu0 0
  %417 = vmatprep.subr.bf16.mxu0 0
  %418 = vmatpush1.bf16.msra.mxu0 0
  %419 = vmatprep.subr.bf16.mxu0 0
  %420 = vmatpush1.bf16.msra.mxu0 0
  %421 = vmatprep.subr.bf16.mxu0 0
  %422 = vmatpush1.bf16.msra.mxu0 0
  %423 = vmatprep.subr.bf16.mxu0 0
  %424 = vmatpush1.bf16.msra.mxu0 0
  %425 = vmatprep.subr.bf16.mxu0 0
  %426 = vmatpush1.bf16.msra.mxu0 0
  %427 = vmatprep.subr.bf16.mxu0 0
  %428 = vmatpush1.bf16.msra.mxu0 0
  %429 = vmatprep.mubr.bf16.mxu0 0
  %430 = vmatmul.mubr.bf16.gmra.mrb[0].mxu0 %v49
  %v431 = vpop.f32.mrb[0].mxu0
  %v432 = vadd.f32 %v345, %v431
  %v433 = vpop.f32.mrb[0].mxu0
  %v434 = vpop.f32.mrb[0].mxu0
  %v435 = vadd.f32 %v346, %v434
  %v436 = vpop.f32.mrb[0].mxu0
  %437 = vmatprep.mubr.bf16.mxu0 0
  %438 = vmatmul.mubr.bf16.gmra.mrb[0].mxu0 %v50
  %v439 = vpop.f32.mrb[0].mxu0
  %v440 = vadd.f32 %v347, %v439
  %v441 = vpop.f32.mrb[0].mxu0
  %v442 = vpop.f32.mrb[0].mxu0
  %v443 = vadd.f32 %v348, %v442
  %v444 = vpop.f32.mrb[0].mxu0
  %445 = vdwg.mxu0
  %vm446 = vcmp.eq.s32.totalorder %v328, 15
  %vm447 = vcmp.eq.s32.totalorder %v329, 15
  %vm448 = vcmp.eq.s32.totalorder %v330, 15
  %vm449 = vcmp.eq.s32.totalorder %v331, 15
  %v450 = vrot.slane %v265, 1
  %v451 = vrot.slane %v268, 1
  %v452 = vrot.slane %v273, 1
  %v453 = vrot.slane %v276, 1
  %vm454 = vcmp.lt.s32.totalorder %v280, 7
  %v455 = vsel %vm454, %v452, %v453
  %v456 = vsel %vm454, %v451, %v452
  %v457 = vsel %vm454, %v450, %v451
  %v458 = vsel %vm454, %v453, %v450
  %v459 = vsel %vm446, 0.0, %v457
  %v460 = vsel %vm447, 0.0, %v456
  %v461 = vsel %vm448, 0.0, %v455
  %v462 = vsel %vm449, 0.0, %v458
  %v463 = vadd.f32 %v432, %v459
  %v464 = vadd.f32 %v435, %v460
  %v465 = vadd.f32 %v440, %v461
  %v466 = vadd.f32 %v443, %v462
  %v467 = vadd.f32 %v463, %v464
  %v468 = vadd.f32 %v467, %v465
  %v469 = vadd.f32 %v468, %v466
  %v470 = vrot.slane %v469, 4
  %v471 = vadd.f32 %v469, %v470
  %v472 = vrot.slane %v471, 2
  %v473 = vadd.f32 %v471, %v472
  %v474 = vrot.slane %v473, 1
  %v475 = vadd.f32 %v473, %v474
  %v476 = vmul.f32 %v463, %v463
  %v477 = vmul.f32 %v464, %v464
  %v478 = vmul.f32 %v465, %v465
  %v479 = vmul.f32 %v466, %v466
  %v480 = vadd.f32 %v476, %v477
  %v481 = vadd.f32 %v480, %v478
  %v482 = vadd.f32 %v481, %v479
  %v483 = vrot.slane %v482, 4
  %v484 = vadd.f32 %v482, %v483
  %v485 = vrot.slane %v484, 2
  %v486 = vadd.f32 %v484, %v485
  %v487 = vrot.slane %v486, 1
  %v488 = vadd.f32 %v486, %v487
  %vm489 = vcmask 1040384
  %v490 = vsel %vm489, %v475, %v488
  %v491 = vld [vmem:[%s2] sm:$0xff]
  %v492 = vld [vmem:[%s2 + $0x8] sm:$0xff]
  %v493 = vld [vmem:[%s2 + $0x10] sm:$0xff]
  %v494 = vld [vmem:[%s2 + $0x18] sm:$0xff]
  %v495 = vld [vmem:[%s2 + $0x20] sm:$0xff]
  %v496 = vld [vmem:[%s2 + $0x28] sm:$0xff]
  %v497 = vld [vmem:[%s2 + $0x30] sm:$0xff]
  %v498 = vld [vmem:[%s2 + $0x38] sm:$0xff]
  %v499 = vld [vmem:[%s2 + $0x40] sm:$0xff]
  %v500 = vld [vmem:[%s2 + $0x48] sm:$0xff]
  %v501 = vld [vmem:[%s2 + $0x50] sm:$0xff]
  %v502 = vld [vmem:[%s2 + $0x58] sm:$0xff]
  %v503 = vld [vmem:[%s2 + $0x60] sm:$0xff]
  %v504 = vld [vmem:[%s2 + $0x68] sm:$0xff]
  %v505 = vld [vmem:[%s2 + $0x70] sm:$0xff]
  %v506 = vld [vmem:[%s2 + $0x78] sm:$0xff]
  %507 = vmatprep.subr.mxu0 0.0
  %508 = vmatpush1.msra.mxu0 %v491
  %509 = vmatprep.subr.mxu0 0.0
  %510 = vmatpush1.msra.mxu0 %v492
  %511 = vmatprep.subr.mxu0 0.0
  %512 = vmatpush1.msra.mxu0 %v493
  %513 = vmatprep.subr.mxu0 0.0
  %514 = vmatpush1.msra.mxu0 %v494
  %515 = vmatprep.subr.mxu0 0.0
  %516 = vmatpush1.msra.mxu0 %v495
  %517 = vmatprep.subr.mxu0 0.0
  %518 = vmatpush1.msra.mxu0 %v496
  %519 = vmatprep.subr.mxu0 0.0
  %520 = vmatpush1.msra.mxu0 %v497
  %521 = vmatprep.subr.mxu0 0.0
  %522 = vmatpush1.msra.mxu0 %v498
  %523 = vmatprep.subr.mxu0 0.0
  %524 = vmatpush1.msra.mxu0 %v499
  %525 = vmatprep.subr.mxu0 0.0
  %526 = vmatpush1.msra.mxu0 %v500
  %527 = vmatprep.subr.mxu0 0.0
  %528 = vmatpush1.msra.mxu0 %v501
  %529 = vmatprep.subr.mxu0 0.0
  %530 = vmatpush1.msra.mxu0 %v502
  %531 = vmatprep.subr.mxu0 0.0
  %532 = vmatpush1.msra.mxu0 %v503
  %533 = vmatprep.subr.mxu0 0.0
  %534 = vmatpush1.msra.mxu0 %v504
  %535 = vmatprep.subr.mxu0 0.0
  %536 = vmatpush1.msra.mxu0 %v505
  %537 = vmatprep.subr.mxu0 0.0
  %538 = vmatpush1.msra.mxu0 %v506
  %539 = vmatprep.subr.mxu0 0.0
  %540 = vmatpush1.msra.mxu0 0.0
  %541 = vmatprep.subr.mxu0 0.0
  %542 = vmatpush1.msra.mxu0 0.0
  %543 = vmatprep.subr.mxu0 0.0
  %544 = vmatpush1.msra.mxu0 0.0
  %545 = vmatprep.subr.mxu0 0.0
  %546 = vmatpush1.msra.mxu0 0.0
  %547 = vmatprep.subr.mxu0 0.0
  %548 = vmatpush1.msra.mxu0 0.0
  %549 = vmatprep.subr.mxu0 0.0
  %550 = vmatpush1.msra.mxu0 0.0
  %551 = vmatprep.subr.mxu0 0.0
  %552 = vmatpush1.msra.mxu0 0.0
  %553 = vmatprep.subr.mxu0 0.0
  %554 = vmatpush1.msra.mxu0 0.0
  %555 = vmatprep.subr.mxu0 0.0
  %556 = vmatpush1.msra.mxu0 0.0
  %557 = vmatprep.subr.mxu0 0.0
  %558 = vmatpush1.msra.mxu0 0.0
  %559 = vmatprep.subr.mxu0 0.0
  %560 = vmatpush1.msra.mxu0 0.0
  %561 = vmatprep.subr.mxu0 0.0
  %562 = vmatpush1.msra.mxu0 0.0
  %563 = vmatprep.subr.mxu0 0.0
  %564 = vmatpush1.msra.mxu0 0.0
  %565 = vmatprep.subr.mxu0 0.0
  %566 = vmatpush1.msra.mxu0 0.0
  %567 = vmatprep.subr.mxu0 0.0
  %568 = vmatpush1.msra.mxu0 0.0
  %569 = vmatprep.subr.mxu0 0.0
  %570 = vmatpush1.msra.mxu0 0.0
  %571 = vmatprep.mubr.f32.mxu0 0.0
  %572 = vmatmul.mubr.f32.gmra.mrb[0].mxu0 %v490
  %v573 = vpop.f32.mrb[0].mxu0
  %v574 = vadd.f32 0.0, %v573
  %v575 = vpop.f32.mrb[0].mxu0
  %576 = vdwg.mxu0
  %v577 = vmul.f32 %v574, %v574
  %v579 = vrot.slane %v577, 7
  %v581 = vsub.f32 %v574, %v579
  %v582 = vadd.f32 %v581, 1e-05
  %v583 = vrsqrt.pop %v582
  %v584 = vld [vmem:[%s3] sm:$0x1]
  %v586 = vlaneseq
  %v587 = vshrl.u32 %v586, 7
  %v588 = vsub.s32 0, %v587
  %v589 = vrot.slane %v584, %v588
  %v591 = vmul.f32 %v583, %v589
  %v592 = vld [vmem:[%s4] sm:$0x1]
  %v594 = vrot.slane %v591, 1
  %v596 = vmul.f32 %v574, %v594
  %v597 = vsub.f32 %v592, %v596
  %v598 = vunpack.c.l.bf16 %v21
  %v599 = vunpack.c.l.bf16 %v22
  %v600 = vunpack.c.l.bf16 %v23
  %v601 = vunpack.c.l.bf16 %v24
  %v602 = vlaneseq
  %v603 = vshrl.u32 %v602, 7
  %v604 = vsub.s32 1, %v603
  %v605 = vrot.slane %v591, %v604
  %v606 = vmul.f32 %v463, %v605
  %v607 = vmul.f32 %v464, %v605
  %v608 = vmul.f32 %v465, %v605
  %v609 = vmul.f32 %v466, %v605
  %v610 = vadd.f32 %v598, %v606
  %v611 = vadd.f32 %v599, %v607
  %v612 = vadd.f32 %v600, %v608
  %v613 = vadd.f32 %v601, %v609
  %v615 = vlaneseq
  %v616 = vshrl.u32 %v615, 7
  %v617 = vsub.s32 0, %v616
  %v618 = vrot.slane %v597, %v617
  %v620 = vadd.f32 %v610, %v618
  %v621 = vadd.f32 %v611, %v618
  %v622 = vadd.f32 %v612, %v618
  %v623 = vadd.f32 %v613, %v618
  %624 = vst [vmem:[%s5] sm:$0xff] %v620
  %625 = vst [vmem:[%s5 + $0x8] sm:$0xff] %v621
  %626 = vst [vmem:[%s5 + $0x10] sm:$0xff] %v622
  %627 = vst [vmem:[%s5 + $0x18] sm:$0xff] %v623
  // Predicated region
  $region22: #{resnet_block_forward.1} parent=0 // pred_check
    _
  $region23: #{resnet_block_forward.1} parent=0 // pred_check_branch
    %629 = sbr.rel (0) target = $region25
  $region24: #{resnet_block_forward.1} parent=0 // pred_region
    _
  $region25: #{resnet_block_forward.1} parent=0 // pred_fallthru
    _
  // Predicated region
  $region26: #{resnet_block_forward.1} parent=0 // pred_check
    _
  $region27: #{resnet_block_forward.1} parent=0 // pred_check_branch
    %631 = sbr.rel (0) target = $region29
  $region28: #{resnet_block_forward.1} parent=0 // pred_region
    _
  $region29: #{resnet_block_forward.1} parent=0 // pred_fallthru
    _

</llo_original>
